<compile_context>
chip_gen: v5e
topology: v5e:2x2
jax: 0.10.0
libtpu: 0.0.40
codegen_flags: <defaults>
</compile_context>

<pallas_src>
import math

import jax
import jax.numpy as jnp
from jax.experimental import pallas as pl
from jax.experimental.pallas import tpu as pltpu


# ----------------------------------------------------------------------------
# PE table construction (matches the PyTorch buffer).
# ----------------------------------------------------------------------------
def build_pe(d_model: int, max_len: int = 5000,
             dtype=jnp.float32) -> jnp.ndarray:
    """Sinusoidal positional-encoding table (max_len, d_model), built once in
    the model dtype so the kernel path never needs a per-call astype."""
    position = jnp.arange(max_len, dtype=jnp.float32)[:, None]            # (L, 1)
    div_term = jnp.exp(
        jnp.arange(0, d_model, 2, dtype=jnp.float32)
        * (-math.log(10000.0) / d_model)
    )                                                                      # (ceil(D/2),)
    angles = position * div_term                                           # (L, ceil(D/2))
    pe = jnp.zeros((max_len, d_model), dtype=jnp.float32)
    pe = pe.at[:, 0::2].set(jnp.sin(angles))
    # Guard odd d_model (the torch version would shape-error); slice cos terms.
    pe = pe.at[:, 1::2].set(jnp.cos(angles)[:, : d_model // 2])
    return pe.astype(dtype)


# ----------------------------------------------------------------------------
# Kernel body: one vld + TB vadds + vst, no relayout.
# ----------------------------------------------------------------------------
def _add_pe_kernel(x_ref, pe_ref, o_ref):
    # x_ref / o_ref: (TB, TS, L); pe_ref: (TS, L) -> numpy-broadcast over TB.
    o_ref[...] = x_ref[...] + pe_ref[...]


# ----------------------------------------------------------------------------
# Hardware-aware heuristics (all best-effort, with safe fallbacks).
# ----------------------------------------------------------------------------
def _num_tensorcores() -> int:
    """Best-effort TensorCores-per-device guess (v7x / megacore detection)."""
    try:
        kind = jax.devices()[0].device_kind.lower()
    except Exception:
        return 1
    if "7" in kind or "v4" in kind or "v5p" in kind:
        return 2
    return 1


def _vmem_limit_bytes() -> int:
    """Generation-aware scoped-VMEM limit (and tile budget)."""
    try:
        cap = int(getattr(pltpu.get_tpu_info(), "vmem_capacity_bytes", 0))
    except Exception:
        cap = 0
    if cap <= 0:
        return 32 * 1024 * 1024            # safe on v5e / v6e / v7x
    # Leave ~half of physical VMEM for the compiler / other buffers; never ask
    # for more than 64 MiB (plenty for a memory-bound add).
    return int(min(max(cap // 2, 32 * 1024 * 1024), 64 * 1024 * 1024))


def _default_target_tile_bytes() -> int:
    # Higher-bandwidth multi-TC parts (v7x) hide more DMA behind the ~0.35 us
    # per-step overhead, so prefer bigger tiles there; 2 MiB is already ~86%
    # of HBM roofline on v5e/v6e per measured tiled-add data.
    return (4 if _num_tensorcores() >= 2 else 2) * 1024 * 1024


def _sublane_align(dtype) -> int:
    """Preferred row-tile alignment: 8 rows/vreg for 32-bit, 16 for 16-bit,
    32 for 8-bit packed dtypes."""
    size = jnp.dtype(dtype).itemsize
    if size >= 4:
        return 8
    if size == 2:
        return 16
    return 32


def _best_batch_tile(batch: int, cap: int) -> int:
    """Largest divisor of `batch` that is <= cap (avoids ragged batch tiles)."""
    cap = max(1, min(cap, batch))
    for t in range(cap, 0, -1):
        if batch % t == 0:
            return t
    return 1


def _best_row_tile(rows: int, cap: int, align: int) -> int:
    """Largest `align`-aligned row tile <= cap, preferring one that divides
    `rows` so the last block is not ragged/masked."""
    cap = min(cap, rows)
    top = (cap // align) * align
    probe = top
    while probe >= align:
        if rows % probe == 0:
            return probe
        probe -= align
    # No aligned divisor: largest aligned tile (ragged last block is masked,
    # which is correct, just slightly wasteful).
    return top if top >= align else cap


def _choose_block(batch: int, rows: int, lanes: int, itemsize: int,
                  vmem_budget_bytes: int, target_tile_bytes: int,
                  sub_align: int) -> tuple[int, int]:
    """Pick (TB, TS) so the x tile is ~target_tile_bytes and the
    double-buffered working set 2*(x + out + pe) ~= 6 * x_tile fits VMEM."""
    row_bytes = lanes * itemsize
    max_tile_bytes = min(int(target_tile_bytes), vmem_budget_bytes // 6)
    max_tile_bytes = max(max_tile_bytes, row_bytes * sub_align)
    max_rows_total = max(1, max_tile_bytes // row_bytes)      # TB * TS rows

    if rows <= max_rows_total:
        ts = rows                                              # full-dim block
        tb = _best_batch_tile(batch, max(1, max_rows_total // max(rows, 1)))
    else:
        ts = _best_row_tile(rows, max_rows_total, sub_align)
        tb = 1
    return tb, ts


# ----------------------------------------------------------------------------
# Public wrapper: forward pass of PositionalEncoding.
# ----------------------------------------------------------------------------
def positional_encoding(x: jnp.ndarray, pe: jnp.ndarray, *,
                        max_len: int | None = None,
                        target_tile_bytes: int | None = None,
                        min_pallas_bytes: int = 1024 * 1024,
                        donate_x: bool = False) -> jnp.ndarray:
    """x + pe[:seq_len] with broadcast over batch.  x: (B, S, D)."""
    if x.ndim != 3:
        raise ValueError(
            f"Input to PositionalEncoding must be 3D (batch, seq_len, d_model), got {x.shape}"
        )
    if max_len is None:
        max_len = pe.shape[0]
    # Match the PyTorch module: truncate sequences longer than max_len.
    if x.shape[1] > max_len:
        x = x[:, :max_len, :]
    B, S, D = x.shape

    pe_slice = pe[:S, :]
    if pe_slice.dtype != x.dtype:
        pe_slice = pe_slice.astype(x.dtype)

    itemsize = jnp.dtype(x.dtype).itemsize
    total_bytes = B * S * D * itemsize
    if total_bytes < min_pallas_bytes:
        # Tiny problems: pallas_call dispatch + per-step overhead dwarfs the
        # data movement; XLA's fused broadcast-add is already at roofline.
        return x + pe_slice[None, :, :]

    # ---- lane-dense fold -----------------------------------------------
    # If D is not a multiple of 128 every store would lower to masked
    # vst.msk.  When (S*D) % 128 == 0, reshape both x and pe identically
    # (free row-major views) so the last dim is exactly 128 lanes.
    if D % 128 == 0 or (S * D) % 128 != 0:
        rows, lanes = S, D
        x_eff, pe_eff = x, pe_slice
        folded = False
    else:
        lanes = 128
        rows = (S * D) // 128
        x_eff = x.reshape(B, rows, lanes)
        pe_eff = pe_slice.reshape(rows, lanes)
        folded = True
    # TODO(synk): when both D % 128 != 0 and (S*D) % 128 != 0 we fall back to
    # the masked-store path; a production version could pad D up to 128.

    vmem_limit = _vmem_limit_bytes()
    if target_tile_bytes is None:
        target_tile_bytes = _default_target_tile_bytes()
    sub = _sublane_align(x.dtype)
    tb, ts = _choose_block(B, rows, lanes, itemsize, vmem_limit,
                           target_tile_bytes, sub)

    num_s = pl.cdiv(rows, ts)
    num_b = pl.cdiv(B, tb)

    # Multi-TensorCore chips (v7x megacore): make sure there are >=2
    # independent grid units so both cores get work.
    if num_s * num_b < 2 and _num_tensorcores() >= 2:
        if B >= 2:
            tb = _best_batch_tile(B, max(1, B // 2))
        elif rows % (2 * sub) == 0:
            ts = rows // 2
        num_s = pl.cdiv(rows, ts)
        num_b = pl.cdiv(B, tb)

    grid_spec = pltpu.PrefetchScalarGridSpec(
        num_scalar_prefetch=0,
        # Batch is the innermost grid axis: the PE block index (s, 0) is
        # constant across consecutive steps, so the PE tile stays
        # VMEM-resident instead of being re-fetched per batch tile.
        grid=(num_s, num_b),
        in_specs=[
            pl.BlockSpec((tb, ts, lanes), lambda s, b: (b, s, 0)),   # x
            pl.BlockSpec((ts, lanes), lambda s, b: (s, 0)),          # pe
        ],
        out_specs=pl.BlockSpec((tb, ts, lanes), lambda s, b: (b, s, 0)),
    )

    out = pl.pallas_call(
        _add_pe_kernel,
        out_shape=jax.ShapeDtypeStruct((B, rows, lanes), x.dtype),
        grid_spec=grid_spec,
        compiler_params=pltpu.CompilerParams(
            dimension_semantics=("parallel", "parallel"),
            vmem_limit_bytes=vmem_limit,
        ),
        # Optional: alias x to the output (useful when the caller donates x;
        # halves the HBM footprint of a long-sequence activation).
        input_output_aliases=({0: 0} if donate_x else {}),
    )(x_eff, pe_eff)

    if folded:
        out = out.reshape(B, S, D)
    return out


# ----------------------------------------------------------------------------
# Self-test.
# ----------------------------------------------------------------------------
if __name__ == "__main__":
    # 1) Small shapes consistent with the module's forward: (batch, seq, d_model).
    #    D=32 exercises the lane-dense fold (S*D=256 -> (B, 2, 128) blocks).
    batch, seq_len, d_model = 2, 8, 32
    max_len = 64

    key = jax.random.PRNGKey(0)
    x = jax.random.normal(key, (batch, seq_len, d_model), dtype=jnp.float32)
    pe = build_pe(d_model, max_len, dtype=x.dtype)

    out = positional_encoding(x, pe, max_len=max_len, min_pallas_bytes=0)
    out = jax.block_until_ready(out)
    ref = x + pe[None, :seq_len, :]
    assert out.shape == (batch, seq_len, d_model)
    assert jnp.allclose(out, ref, atol=1e-6), "mismatch (folded small case)"

    # 2) Lane-dense D (% 128 == 0) with a multi-tile grid (small target tile
    #    forces sequence tiling: grid = (2, 2)).
    B2, S2, D2 = 2, 256, 128
    x2 = jax.random.normal(jax.random.PRNGKey(0), (B2, S2, D2), dtype=jnp.float32)
    pe2 = build_pe(D2, max_len=512, dtype=x2.dtype)
    out2 = positional_encoding(x2, pe2, min_pallas_bytes=0,
                               target_tile_bytes=64 * 1024)
    out2 = jax.block_until_ready(out2)
    ref2 = x2 + pe2[None, :S2, :]
    assert jnp.allclose(out2, ref2, atol=1e-6), "mismatch (tiled case)"

    # 3) Narrow, un-foldable D (S*D not a multiple of 128): masked-store
    #    fallback path, full-dim blocks.
    B3, S3, D3 = 2, 10, 24
    x3 = jax.random.normal(jax.random.PRNGKey(0), (B3, S3, D3), dtype=jnp.float32)
    pe3 = build_pe(D3, max_len=32, dtype=x3.dtype)
    out3 = positional_encoding(x3, pe3, min_pallas_bytes=0)
    out3 = jax.block_until_ready(out3)
    ref3 = x3 + pe3[None, :S3, :]
    assert jnp.allclose(out3, ref3, atol=1e-6), "mismatch (fallback case)"

    # 4) Small-problem fast path (default min_pallas_bytes): pure-JAX add.
    out4 = jax.block_until_ready(positional_encoding(x, pe, max_len=max_len))
    assert jnp.allclose(out4, ref, atol=1e-6), "mismatch (fast path)"

    # 5) Truncation when seq_len > max_len (matches the PyTorch module) and
    #    x->out aliasing option.
    x5 = jax.random.normal(jax.random.PRNGKey(0), (2, 70, d_model), dtype=jnp.float32)
    out5 = positional_encoding(x5, pe, min_pallas_bytes=0, donate_x=True)
    out5 = jax.block_until_ready(out5)
    ref5 = x5[:, :max_len, :] + pe[None, :max_len, :]
    assert out5.shape == (2, max_len, d_model)
    assert jnp.allclose(out5, ref5, atol=1e-6), "mismatch (truncation case)"

    print("KERNEL_OK")
</pallas_src>

<mosaic_0001>
module attributes {stable_mosaic.version = 11 : i64} {
  func.func @_add_pe_kernel(%arg0: i32, %arg1: i32, %arg2: memref<2x2x128xf32, #tpu.memory_space<vmem>>, %arg3: memref<2x128xf32, #tpu.memory_space<vmem>>, %arg4: memref<2x2x128xf32, #tpu.memory_space<vmem>>) attributes {dimension_semantics = [#tpu.dimension_semantics<parallel>, #tpu.dimension_semantics<parallel>], iteration_bounds = array<i64: 1, 1>, scalar_prefetch = 0 : i64, scratch_operands = 0 : i64, tpu.core_type = #tpu.core_type<tc>, window_params = [{transform_indices = @transform_0, window_bounds = array<i64: 2, 2, 128>}, {transform_indices = @transform_1, window_bounds = array<i64: 2, 128>}, {transform_indices = @transform_2, window_bounds = array<i64: 2, 2, 128>}]} {
    %c0 = arith.constant 0 : index
    %c0_0 = arith.constant 0 : index
    %c0_1 = arith.constant 0 : index
    %0 = vector.load %arg2[%c0, %c0_0, %c0_1] : memref<2x2x128xf32, #tpu.memory_space<vmem>>, vector<2x2x128xf32>
    %c0_2 = arith.constant 0 : index
    %c0_3 = arith.constant 0 : index
    %1 = vector.load %arg3[%c0_2, %c0_3] : memref<2x128xf32, #tpu.memory_space<vmem>>, vector<2x128xf32>
    %2 = vector.shape_cast %1 : vector<2x128xf32> to vector<1x2x128xf32>
    %3 = vector.broadcast %2 : vector<1x2x128xf32> to vector<2x2x128xf32>
    %4 = arith.addf %0, %3 : vector<2x2x128xf32>
    %c0_4 = arith.constant 0 : index
    %c0_5 = arith.constant 0 : index
    %c0_6 = arith.constant 0 : index
    %5 = vector.load %arg4[%c0_4, %c0_5, %c0_6] : memref<2x2x128xf32, #tpu.memory_space<vmem>>, vector<2x2x128xf32>
    tpu.vector_store %arg4[%c0_4, %c0_5, %c0_6], %4 {strides = array<i32>} : memref<2x2x128xf32, #tpu.memory_space<vmem>>, vector<2x2x128xf32>,
    return
  }
  func.func @transform_0(%arg0: i32, %arg1: i32) -> (i32, i32, i32) {
    %c0_i32 = arith.constant 0 : i32
    %c0_i32_0 = arith.constant 0 : i32
    return %arg1, %arg0, %c0_i32 : i32, i32, i32
  }
  func.func @transform_1(%arg0: i32, %arg1: i32) -> (i32, i32) {
    %c0_i32 = arith.constant 0 : i32
    %c0_i32_0 = arith.constant 0 : i32
    return %arg0, %c0_i32 : i32, i32
  }
  func.func @transform_2(%arg0: i32, %arg1: i32) -> (i32, i32, i32) {
    %c0_i32 = arith.constant 0 : i32
    %c0_i32_0 = arith.constant 0 : i32
    return %arg1, %arg0, %c0_i32 : i32, i32, i32
  }
}

</mosaic_0001>

<llo_original>
// kernel: tpu_custom_call.1
$region0: #{tpu_custom_call.1}
  #allocation0 [shape = 'u32[]', space=smem, size = 0x4, offset = 0x4, fixed_abs, tag = 'smem constant byte address 0x4 - core index']
  #allocation1 [shape = 'u32[72,128]{1,0:T(1,128)}', space=vmem, size = 0x9000, scoped, tag = 'internal scratch']
  %s0 = inlined_call_operand.hbm [shape: f32[2,2,128], index: 0, kind: input, shape index: {}]
  %s1 = inlined_call_operand.hbm [shape: f32[2,128], index: 1, kind: input, shape index: {}]
  %s2 = inlined_call_operand.hbm [shape: f32[2,2,128], index: 2, kind: output, shape index: {}]
  %s3 = sld [smem:[#allocation0]]
  $region26: #{tpu_custom_call.1} parent=0
    _
  %s5 = ssub.s32 1, %s3
  %s6 = scalar_select 0, %s5, %s3
  $region1: #{tpu_custom_call.1} parent=0
    #allocation2 [shape = 'u8[2048]{0}', space=vmem, size = 0x800, scoped, tag = 'input window, operand 0, single buffered']
    #allocation3 [shape = 's32[1]{0}', space=sflag, size = 0x4, scoped, tag = 'scoped memory for tpu_custom_call.1']
    #allocation4 [shape = 's32[1]{0}', space=sflag, size = 0x4, scoped, tag = 'scoped memory for tpu_custom_call.1']
    #allocation5 [shape = 'u8[1024]{0}', space=vmem, size = 0x400, scoped, tag = 'input window, operand 1, single buffered']
    #allocation6 [shape = 's32[1]{0}', space=sflag, size = 0x4, scoped, tag = 'scoped memory for tpu_custom_call.1']
    #allocation7 [shape = 'u8[2048]{0}', space=vmem, size = 0x800, scoped, tag = 'output window, operand 0, single buffered']
    %7 = vsyncpa [#allocation3], 0
    %8 = vsyncpa [#allocation6], 0
    %9 = vsyncpa [#allocation4], 0
    // Predicated region
    $region2: #{tpu_custom_call.1} parent=1 // pred_check
      _
    $region3: #{tpu_custom_call.1} parent=1 // pred_check_branch
      %11 = sbr.rel (0) target = $region5
    $region4: #{tpu_custom_call.1} parent=1 // pred_region
      %13 = vsyncadd [#allocation3], 0
      %s14 = sshll.u32 %s0, 4
      %s15 = int_to_ptr.hbm [resolvable:$true] %s14
      %s16 = sshll.u32 [#allocation2], 4
      %s17 = int_to_ptr.vmem [resolvable:$true] %s16
      %22 = dma.hbm_to_vmem [thread:$0]  %s15, 64, %s17, [#allocation3], 32, 32, 2
    $region5: #{tpu_custom_call.1} parent=1 // pred_fallthru
      _
    // Predicated region
    $region6: #{tpu_custom_call.1} parent=1 // pred_check
      _
    $region7: #{tpu_custom_call.1} parent=1 // pred_check_branch
      %24 = sbr.rel (0) target = $region9
    $region8: #{tpu_custom_call.1} parent=1 // pred_region
      %26 = vsyncadd [#allocation6], 0
      %s28 = sshll.u32 %s1, 4
      %s29 = int_to_ptr.hbm [resolvable:$true] %s28
      %s30 = sshll.u32 [#allocation5], 4
      %s31 = int_to_ptr.vmem [resolvable:$true] %s30
      %33 = dma.hbm_to_vmem [thread:$0]  %s29, 32, %s31, [#allocation6]
    $region9: #{tpu_custom_call.1} parent=1 // pred_fallthru
      _
    // Predicated region
    $region10: #{tpu_custom_call.1} parent=1 // pred_check
      _
    $region11: #{tpu_custom_call.1} parent=1 // pred_check_branch
      %35 = sbr.rel (0) target = $region13
    $region12: #{tpu_custom_call.1} parent=1 // pred_region
      %37 = dma.done [#allocation3], 64
    $region13: #{tpu_custom_call.1} parent=1 // pred_fallthru
      _
    // Predicated region
    $region14: #{tpu_custom_call.1} parent=1 // pred_check
      _
    $region15: #{tpu_custom_call.1} parent=1 // pred_check_branch
      %39 = sbr.rel (0) target = $region17
    $region16: #{tpu_custom_call.1} parent=1 // pred_region
      %41 = dma.done [#allocation6], 32
    $region17: #{tpu_custom_call.1} parent=1 // pred_fallthru
      _
    %v42 = vld [vmem:[#allocation2] sm:$0x3]
    %v43 = vld [vmem:[#allocation2 + $0x2] sm:$0x3]
    %v44 = vld [vmem:[#allocation5] sm:$0x3]
    %v45 = vadd.f32 %v42, %v44
    %v46 = vadd.f32 %v43, %v44
    %47 = vst [vmem:[#allocation7] sm:$0x3] %v45
    %48 = vst [vmem:[#allocation7 + $0x2] sm:$0x3] %v46
    // Predicated region
    $region18: #{tpu_custom_call.1} parent=1 // pred_check
      _
    $region19: #{tpu_custom_call.1} parent=1 // pred_check_branch
      %50 = sbr.rel (0) target = $region21
    $region20: #{tpu_custom_call.1} parent=1 // pred_region
      %52 = vsyncadd [#allocation4], 0
      %s53 = sshll.u32 [#allocation7], 4
      %s54 = int_to_ptr.vmem [resolvable:$true] %s53
      %s55 = sshll.u32 %s2, 4
      %s56 = int_to_ptr.hbm [resolvable:$true] %s55
      %61 = dma.vmem_to_hbm [thread:$0]  %s54, 64, %s56, [#allocation4], 32, 32, 2
    $region21: #{tpu_custom_call.1} parent=1 // pred_fallthru
      _
    // Predicated region
    $region22: #{tpu_custom_call.1} parent=1 // pred_check
      _
    $region23: #{tpu_custom_call.1} parent=1 // pred_check_branch
      %63 = sbr.rel (0) target = $region25
    $region24: #{tpu_custom_call.1} parent=1 // pred_region
      %65 = dma.done [#allocation4], 64
    $region25: #{tpu_custom_call.1} parent=1 // pred_fallthru
      _
    %66 = vsyncpa [#allocation3], 1
    %67 = vsyncpa [#allocation6], 1
    %68 = vsyncpa [#allocation4], 1

</llo_original>
